<compile_context>
chip_gen: v7x
topology: tpu7x:2x2x1
jax: 0.10.0
libtpu: 0.0.40
codegen_flags: <defaults>
</compile_context>

<pallas_src>
import functools

import jax
import jax.numpy as jnp
from jax import lax
from jax.experimental import pallas as pl
from jax.experimental.pallas import tpu as pltpu


def _round_up(x, m):
    return (x + m - 1) // m * m


def _sublane(itemsize):
    # Second-minor tiling: 8 rows for 4-byte elements, 16 for 2-byte.
    return max(8, 32 // itemsize)


# ---------------------------------------------------------------------------
# Kernel 1: folded-taps path (small Cin).  The wrapper packs all ks*ks taps
# into the channel dim (im2col-in-K), so each grid step is a single MXU matmul
# with K = ks*ks*Cin plus a bias + ReLU epilogue.
# ---------------------------------------------------------------------------
def _im2col_matmul_kernel(x_ref, w_ref, bias_ref, o_ref):
    # x_ref:    (1, TH, Wo, Kp)   packed input rows (Kp = ks*ks*Cin)
    # w_ref:    (Kp, TC)          BN scale already folded in
    # bias_ref: (1, TC) f32       folded BN bias = beta - mean * scale
    # o_ref:    (1, TH, Wo, TC)
    TH, Wo, Kp = x_ref.shape[1], x_ref.shape[2], x_ref.shape[3]
    TC = o_ref.shape[3]
    lhs = x_ref[...].reshape(TH * Wo, Kp)          # leading-dim merge (Wo % 8 == 0)
    acc = jnp.dot(lhs, w_ref[...], preferred_element_type=jnp.float32)
    y = jnp.maximum(acc + bias_ref[...], 0.0)      # folded-BN bias + ReLU
    o_ref[...] = y.reshape(1, TH, Wo, TC).astype(o_ref.dtype)


# ---------------------------------------------------------------------------
# Kernel 2: direct path (larger Cin).  ks*ks MXU matmuls with K = Cin.  BN
# scale is pre-folded into the weights; epilogue is bias + ReLU only.
# ---------------------------------------------------------------------------
def _direct_conv_kernel(x_body_ref, x_halo_ref, w_ref, bias_ref, o_ref,
                        win_ref, *, ks):
    # x_body_ref: (1, TH, Wp, Cin)         body rows of this row-tile's window
    # x_halo_ref: (1, ks-1, Wp, Cin)       halo rows just below the body rows
    # w_ref:      (ks, ks, Cin, TC)
    # bias_ref:   (1, TC) f32
    # o_ref:      (1, TH, Wo, TC)
    # win_ref:    (ks, TH + ks - 1, Wo, Cin) scratch: ks W-shifted window copies
    TH = o_ref.shape[1]
    Wo = o_ref.shape[2]
    TC = o_ref.shape[3]
    Cin = x_body_ref.shape[3]
    halo = ks - 1

    # Build the ks W-shifted copies of the (TH + halo)-row window once; every
    # tap then reads a contiguous slab whose flatten to (TH*Wo, Cin) is layout
    # preserving, so the MXU gets aligned 2-D operands with no per-tap relayout.
    for kw in range(ks):
        win_ref[kw, 0:TH] = x_body_ref[0, :, kw:kw + Wo, :]
        win_ref[kw, TH:TH + halo] = x_halo_ref[0, :, kw:kw + Wo, :]

    # Accumulate in a live f32 value (no scratch read-modify-write); group the
    # adds per kh so at most acc + kh_sum + contrib are live at once.
    acc = None
    for kh in range(ks):
        kh_sum = None
        for kw in range(ks):
            lhs = win_ref[kw, kh:kh + TH].reshape(TH * Wo, Cin)
            contrib = jnp.dot(lhs, w_ref[kh, kw],
                              preferred_element_type=jnp.float32)
            kh_sum = contrib if kh_sum is None else kh_sum + contrib
        acc = kh_sum if acc is None else acc + kh_sum

    y = jnp.maximum(acc + bias_ref[...], 0.0)      # folded-BN bias + ReLU
    o_ref[...] = y.reshape(1, TH, Wo, TC).astype(o_ref.dtype)


def _auto_block_rows(Ho, quantum, vmem_estimate, budget_bytes, *, max_rows=512):
    """Largest row tile (multiple of `quantum`) whose VMEM estimate fits."""
    cap = min(max_rows, _round_up(Ho, quantum))
    if Ho > quantum:
        # Keep nH >= 2 so a dual-TensorCore chip (v7x) gets work on both cores
        # even when batch == 1 and there is a single Cout tile.
        cap = min(cap, _round_up(max(quantum, -(-Ho // 2)), quantum))
    th = quantum
    while th * 2 <= cap and vmem_estimate(th * 2) <= budget_bytes:
        th *= 2
    return th   # `quantum` is the floor even if its estimate overshoots


def _make_grid(N, nC, nH, c_inner):
    """Grid-order heuristic plumbing: index_maps written in canonical (n,c,h)."""
    if c_inner:
        grid = (N, nH, nC)

        def imap(f):
            return lambda n, h, c: f(n, c, h)
    else:
        grid = (N, nC, nH)

        def imap(f):
            return lambda n, c, h: f(n, c, h)
    return grid, imap


def conv_bn_relu(x_nchw, weight_oikk, bn_gamma, bn_beta, bn_mean, bn_var, *,
                 ks=3, stride=1, padding=1, eps=1e-5,
                 compute_dtype=jnp.bfloat16, out_dtype=None,
                 block_rows=None, block_cout=None, fold_taps=None,
                 vmem_limit_bytes=48 * 1024 * 1024):
    """Forward pass of ConvBNReLU (inference BN).  NCHW in / NCHW out.

    Output dtype defaults to `compute_dtype` (halves the HBM write vs f32);
    pass out_dtype=jnp.float32 if the consumer needs f32.  On v5e/v6e
    (128 MiB VMEM) vmem_limit_bytes can be raised to ~96 MiB for larger row
    tiles; keep <= ~56 MiB on v7x (64 MiB per TensorCore).
    """
    assert stride == 1, "only the module's default stride=1 is implemented"
    assert ks >= 2, "ks == 1 is not implemented"
    N, Cin, H, W = x_nchw.shape
    Cout = weight_oikk.shape[0]
    assert weight_oikk.shape == (Cout, Cin, ks, ks)
    if out_dtype is None:
        out_dtype = compute_dtype

    halo = ks - 1
    Ho = H + 2 * padding - ks + 1
    Wo = W + 2 * padding - ks + 1
    assert Ho > 0 and Wo > 0

    # Lane/sublane-friendly padding of the output tile dims.
    Wo_pad = _round_up(Wo, 8)          # sublane dim of the output tile
    Cout_pad = _round_up(Cout, 128)    # lane dim of the output tile

    if block_cout is None:
        # TODO(synk): prefer TC=128 on v5e (4x128x128 MXU); 256 helps v6e/v7x.
        TC = 256 if Cout_pad % 256 == 0 else 128
    else:
        TC = block_cout
    assert TC % 128 == 0 and Cout_pad % TC == 0
    nC = Cout_pad // TC

    in_b = jnp.dtype(compute_dtype).itemsize
    out_b = jnp.dtype(out_dtype).itemsize
    su_in = _sublane(in_b)
    su_out = _sublane(out_b)
    budget = (3 * vmem_limit_bytes) // 4

    # Fold all ks*ks taps into the contraction dim when Cin is small: a single
    # K = ks*ks*Cin matmul per tile instead of ks*ks matmuls with K = Cin.
    fold = (Cin <= 16) if fold_taps is None else bool(fold_taps)

    # ---- folded BatchNorm (inference): scale into the weights, bias apart ----
    scale = (bn_gamma / jnp.sqrt(bn_var + eps)).astype(jnp.float32)
    bias = (bn_beta - bn_mean * scale).astype(jnp.float32)
    bias = jnp.pad(bias, (0, Cout_pad - Cout)).reshape(1, Cout_pad)

    w = jnp.transpose(weight_oikk, (2, 3, 1, 0)).astype(jnp.float32)  # (kh,kw,Ci,Co)
    w = w * scale[None, None, None, :]
    w = jnp.pad(w, ((0, 0), (0, 0), (0, 0), (0, Cout_pad - Cout)))

    x = jnp.transpose(x_nchw, (0, 2, 3, 1)).astype(compute_dtype)     # NHWC

    dims = ("parallel", "parallel", "parallel")

    if fold:
        # ------------------------- folded-taps path -------------------------
        Kp = ks * ks * Cin
        w_k = w.reshape(Kp, Cout_pad).astype(compute_dtype)

        def vmem_estimate(th):
            x_blk = th * _round_up(Wo_pad, su_in) * _round_up(Kp, 128) * in_b
            w_blk = _round_up(Kp, su_in) * TC * in_b
            o_blk = th * _round_up(Wo_pad, su_out) * TC * out_b
            live = 2 * th * Wo_pad * TC * 4            # f32 acc + epilogue temp
            lhs = th * Wo_pad * _round_up(Kp, 128) * in_b
            return 2 * (x_blk + w_blk + o_blk) + live + lhs

        if block_rows is None:
            TH = _auto_block_rows(Ho, 8, vmem_estimate, budget)
        else:
            TH = max(1, int(block_rows))
        Ho_pad = _round_up(Ho, TH)
        nH = Ho_pad // TH

        # Wrapper-side im2col: packed[n, ho, wo, (kh*ks+kw)*Cin + c]
        #                        = x_pad[n, ho + kh, wo + kw, c]
        xp = jnp.pad(x, ((0, 0), (padding, padding), (padding, padding), (0, 0)))
        slabs = [xp[:, kh:kh + Ho, kw:kw + Wo, :]
                 for kh in range(ks) for kw in range(ks)]
        xk = jnp.concatenate(slabs, axis=-1)                      # (N, Ho, Wo, Kp)
        xk = jnp.pad(xk, ((0, 0), (0, Ho_pad - Ho), (0, Wo_pad - Wo), (0, 0)))

        input_bytes = N * Ho_pad * Wo_pad * Kp * in_b
        weight_bytes = Kp * Cout_pad * in_b
        c_inner = (nC - 1) * input_bytes > N * (nH - 1) * weight_bytes
        grid, imap = _make_grid(N, nC, nH, c_inner)

        out = pl.pallas_call(
            _im2col_matmul_kernel,
            out_shape=jax.ShapeDtypeStruct((N, Ho_pad, Wo_pad, Cout_pad),
                                           out_dtype),
            grid_spec=pltpu.PrefetchScalarGridSpec(
                num_scalar_prefetch=0,
                grid=grid,
                in_specs=[
                    pl.BlockSpec((1, TH, Wo_pad, Kp),
                                 imap(lambda n, c, h: (n, h, 0, 0))),
                    pl.BlockSpec((Kp, TC), imap(lambda n, c, h: (0, c))),
                    pl.BlockSpec((1, TC), imap(lambda n, c, h: (0, c))),
                ],
                out_specs=pl.BlockSpec((1, TH, Wo_pad, TC),
                                       imap(lambda n, c, h: (n, h, 0, c))),
            ),
            compiler_params=pltpu.CompilerParams(
                dimension_semantics=dims,
                vmem_limit_bytes=vmem_limit_bytes),
        )(xk, w_k, bias)
    else:
        # --------------------------- direct path ----------------------------
        w_k = w.astype(compute_dtype)                 # (ks, ks, Cin, Cout_pad)

        def vmem_estimate(th):
            Wp_ = Wo_pad + halo
            body = th * _round_up(Wp_, su_in) * _round_up(Cin, 128) * in_b
            halo_b = halo * _round_up(Wp_, su_in) * _round_up(Cin, 128) * in_b
            w_blk = ks * ks * _round_up(Cin, su_in) * TC * in_b
            o_blk = th * _round_up(Wo_pad, su_out) * TC * out_b
            win = (ks * (th + halo) * _round_up(Wo_pad, su_in)
                   * _round_up(Cin, 128) * in_b)
            live = 3 * th * Wo_pad * TC * 4            # acc + kh_sum + contrib
            return 2 * (body + halo_b + w_blk + o_blk) + win + live

        if block_rows is None:
            TH = _auto_block_rows(Ho, halo, vmem_estimate, budget)
        else:
            TH = _round_up(max(1, int(block_rows)), halo)
        Ho_pad = _round_up(Ho, TH)
        nH = Ho_pad // TH
        Hp = Ho_pad + halo
        Wp = Wo_pad + halo

        xd = jnp.pad(x, ((0, 0), (padding, Hp - H - padding),
                         (padding, Wp - W - padding), (0, 0)))

        input_bytes = N * Hp * Wp * Cin * in_b
        weight_bytes = ks * ks * Cin * Cout_pad * in_b
        c_inner = (nC - 1) * input_bytes > N * (nH - 1) * weight_bytes
        grid, imap = _make_grid(N, nC, nH, c_inner)

        kernel = functools.partial(_direct_conv_kernel, ks=ks)
        out = pl.pallas_call(
            kernel,
            out_shape=jax.ShapeDtypeStruct((N, Ho_pad, Wo_pad, Cout_pad),
                                           out_dtype),
            grid_spec=pltpu.PrefetchScalarGridSpec(
                num_scalar_prefetch=0,
                grid=grid,
                in_specs=[
                    # Body rows of this row-tile's input window.
                    pl.BlockSpec((1, TH, Wp, Cin),
                                 imap(lambda n, c, h: (n, h, 0, 0))),
                    # (ks-1) halo rows immediately below the body rows.
                    pl.BlockSpec((1, halo, Wp, Cin),
                                 imap(lambda n, c, h:
                                      (n, ((h + 1) * TH) // halo, 0, 0))),
                    pl.BlockSpec((ks, ks, Cin, TC),
                                 imap(lambda n, c, h: (0, 0, 0, c))),
                    pl.BlockSpec((1, TC), imap(lambda n, c, h: (0, c))),
                ],
                out_specs=pl.BlockSpec((1, TH, Wo_pad, TC),
                                       imap(lambda n, c, h: (n, h, 0, c))),
                scratch_shapes=[
                    pltpu.VMEM((ks, TH + halo, Wo_pad, Cin), compute_dtype)],
            ),
            compiler_params=pltpu.CompilerParams(
                dimension_semantics=dims,
                vmem_limit_bytes=vmem_limit_bytes),
        )(xd, xd, w_k, bias)

    out = out[:, :Ho, :Wo, :Cout]                 # drop row/col/channel padding
    return jnp.transpose(out, (0, 3, 1, 2))       # back to NCHW


# ------------------------------- references ---------------------------------
def _reference(x_nchw, weight_oikk, bn_gamma, bn_beta, bn_mean, bn_var, *,
               padding=1, eps=1e-5):
    y = lax.conv_general_dilated(
        x_nchw.astype(jnp.float32), weight_oikk.astype(jnp.float32),
        window_strides=(1, 1),
        padding=[(padding, padding), (padding, padding)],
        dimension_numbers=("NCHW", "OIHW", "NCHW"))
    scale = bn_gamma / jnp.sqrt(bn_var + eps)
    bias = bn_beta - bn_mean * scale
    y = y * scale[None, :, None, None] + bias[None, :, None, None]
    return jnp.maximum(y, 0.0)


def _reference_rounded(x_nchw, weight_oikk, bn_gamma, bn_beta, bn_mean, bn_var,
                       *, padding=1, eps=1e-5, cdt=jnp.bfloat16):
    """Reference on cdt-rounded operands with the BN scale folded into w."""
    scale = bn_gamma / jnp.sqrt(bn_var + eps)
    bias = bn_beta - bn_mean * scale
    x_r = x_nchw.astype(cdt).astype(jnp.float32)
    w_r = (weight_oikk.astype(jnp.float32)
           * scale[:, None, None, None]).astype(cdt).astype(jnp.float32)
    y = lax.conv_general_dilated(
        x_r, w_r, window_strides=(1, 1),
        padding=[(padding, padding), (padding, padding)],
        dimension_numbers=("NCHW", "OIHW", "NCHW"))
    y = y + bias[None, :, None, None]
    return jnp.maximum(y, 0.0)


if __name__ == "__main__":
    key = jax.random.PRNGKey(0)
    kx, kp0, kp1, kp2 = jax.random.split(key, 4)

    ks = 3
    N, Cin, H, W = 2, 4, 16, 16
    Cout = 8

    x = jax.random.normal(kx, (N, Cin, H, W), dtype=jnp.float32)

    def make_params(rng, cout, cin):
        r1, r2, r3, r4, r5 = jax.random.split(rng, 5)
        # kaiming_normal_(a=1): gain = sqrt(2/(1+1)) = 1, std = 1/sqrt(fan_in)
        fan_in = cin * ks * ks
        wgt = jax.random.normal(r1, (cout, cin, ks, ks), jnp.float32) / \
            jnp.sqrt(jnp.float32(fan_in))
        gamma = 1.0 + 0.2 * jax.random.normal(r2, (cout,), jnp.float32)
        beta = 0.1 * jax.random.normal(r3, (cout,), jnp.float32)
        mean = 0.1 * jax.random.normal(r4, (cout,), jnp.float32)
        var = 1.0 + 0.25 * jax.random.uniform(r5, (cout,), jnp.float32)
        return wgt, gamma, beta, mean, var

    w8, g8, b8, m8, v8 = make_params(kp0, Cout, Cin)
    ref = _reference(x, w8, g8, b8, m8, v8, padding=1)

    # 1) folded-taps path, f32 compute: tight check against the XLA reference.
    out = conv_bn_relu(x, w8, g8, b8, m8, v8, ks=ks, padding=1,
                       compute_dtype=jnp.float32, block_rows=8)
    out = jax.block_until_ready(out)
    assert out.shape == (N, Cout, H, W), out.shape
    assert jnp.allclose(out, ref, atol=2e-4, rtol=2e-4), "fold/f32 mismatch"

    # 2) direct per-tap path, f32 compute (fold disabled): tight check.
    out = conv_bn_relu(x, w8, g8, b8, m8, v8, ks=ks, padding=1,
                       compute_dtype=jnp.float32, block_rows=4,
                       fold_taps=False)
    out = jax.block_until_ready(out)
    assert jnp.allclose(out, ref, atol=2e-4, rtol=2e-4), "direct/f32 mismatch"

    # 3) default fast path: bf16 MXU operands + bf16 output, folded taps.
    out = conv_bn_relu(x, w8, g8, b8, m8, v8, ks=ks, padding=1)
    out = jax.block_until_ready(out)
    ref_r = _reference_rounded(x, w8, g8, b8, m8, v8, padding=1,
                               cdt=jnp.bfloat16)
    assert out.dtype == jnp.bfloat16
    assert jnp.allclose(out.astype(jnp.float32), ref_r,
                        atol=2e-2, rtol=2e-2), "fold/bf16 mismatch"

    # 4) direct path, bf16, two Cout tiles (nC = 2), auto row tile.
    Cout2 = 136
    w2, g2, b2, m2, v2 = make_params(kp1, Cout2, Cin)
    out = conv_bn_relu(x[:1], w2, g2, b2, m2, v2, ks=ks, padding=1,
                       block_cout=128, fold_taps=False)
    out = jax.block_until_ready(out)
    ref_r = _reference_rounded(x[:1], w2, g2, b2, m2, v2, padding=1,
                               cdt=jnp.bfloat16)
    assert out.shape == (1, Cout2, H, W), out.shape
    assert jnp.allclose(out.astype(jnp.float32), ref_r,
                        atol=2e-2, rtol=2e-2), "direct/bf16 mismatch"

    # 5) c-innermost grid order (single row tile, several Cout tiles), f32.
    Cout3 = 264
    w3, g3, b3, m3, v3 = make_params(kp2, Cout3, Cin)
    out = conv_bn_relu(x[:1], w3, g3, b3, m3, v3, ks=ks, padding=1,
                       compute_dtype=jnp.float32, block_rows=16)
    out = jax.block_until_ready(out)
    ref3 = _reference(x[:1], w3, g3, b3, m3, v3, padding=1)
    assert out.shape == (1, Cout3, H, W), out.shape
    assert jnp.allclose(out, ref3, atol=2e-4, rtol=2e-4), "c-inner/f32 mismatch"

    print("KERNEL_OK")
</pallas_src>

<mosaic_0001>
module attributes {stable_mosaic.version = 11 : i64} {
  func.func @_im2col_matmul_kernel(%arg0: i32, %arg1: i32, %arg2: i32, %arg3: memref<1x8x16x36xf32, #tpu.memory_space<vmem>>, %arg4: memref<36x128xf32, #tpu.memory_space<vmem>>, %arg5: memref<1x128xf32, #tpu.memory_space<vmem>>, %arg6: memref<1x8x16x128xf32, #tpu.memory_space<vmem>>) attributes {dimension_semantics = [#tpu.dimension_semantics<parallel>, #tpu.dimension_semantics<parallel>, #tpu.dimension_semantics<parallel>], iteration_bounds = array<i64: 2, 1, 2>, scalar_prefetch = 0 : i64, scratch_operands = 0 : i64, tpu.core_type = #tpu.core_type<tc>, window_params = [{transform_indices = @transform_0, window_bounds = array<i64: 1, 8, 16, 36>}, {transform_indices = @transform_1, window_bounds = array<i64: 36, 128>}, {transform_indices = @transform_2, window_bounds = array<i64: 1, 128>}, {transform_indices = @transform_3, window_bounds = array<i64: 1, 8, 16, 128>}]} {
    %c0 = arith.constant 0 : index
    %c0_0 = arith.constant 0 : index
    %c0_1 = arith.constant 0 : index
    %c0_2 = arith.constant 0 : index
    %0 = vector.load %arg3[%c0, %c0_0, %c0_1, %c0_2] : memref<1x8x16x36xf32, #tpu.memory_space<vmem>>, vector<1x8x16x36xf32>
    %1 = vector.shape_cast %0 : vector<1x8x16x36xf32> to vector<128x36xf32>
    %c0_3 = arith.constant 0 : index
    %c0_4 = arith.constant 0 : index
    %2 = vector.load %arg4[%c0_3, %c0_4] : memref<36x128xf32, #tpu.memory_space<vmem>>, vector<36x128xf32>
    %cst = arith.constant dense<0.000000e+00> : vector<128x128xf32>
    %3 = tpu.matmul %1, %2, %cst {dimension_numbers = #tpu.dot_dimension_numbers<[1], [0], [0], [1], [0, 0, 1, 1], [], []>} : vector<128x36xf32>, vector<36x128xf32>, vector<128x128xf32> -> vector<128x128xf32>
    %c0_5 = arith.constant 0 : index
    %c0_6 = arith.constant 0 : index
    %4 = vector.load %arg5[%c0_5, %c0_6] : memref<1x128xf32, #tpu.memory_space<vmem>>, vector<1x128xf32>
    %5 = vector.broadcast %4 : vector<1x128xf32> to vector<128x128xf32>
    %6 = arith.addf %3, %5 : vector<128x128xf32>
    %cst_7 = arith.constant 0.000000e+00 : f32
    %7 = vector.broadcast %cst_7 : f32 to vector<128x128xf32>
    %8 = arith.maximumf %6, %7 : vector<128x128xf32>
    %9 = vector.shape_cast %8 : vector<128x128xf32> to vector<1x8x16x128xf32>
    %c0_8 = arith.constant 0 : index
    %c0_9 = arith.constant 0 : index
    %c0_10 = arith.constant 0 : index
    %c0_11 = arith.constant 0 : index
    %10 = vector.load %arg6[%c0_8, %c0_9, %c0_10, %c0_11] : memref<1x8x16x128xf32, #tpu.memory_space<vmem>>, vector<1x8x16x128xf32>
    tpu.vector_store %arg6[%c0_8, %c0_9, %c0_10, %c0_11], %9 {strides = array<i32>} : memref<1x8x16x128xf32, #tpu.memory_space<vmem>>, vector<1x8x16x128xf32>,
    return
  }
  func.func @transform_0(%arg0: i32, %arg1: i32, %arg2: i32) -> (i32, i32, i32, i32) {
    %c0_i32 = arith.constant 0 : i32
    %c0_i32_0 = arith.constant 0 : i32
    %c0_i32_1 = arith.constant 0 : i32
    return %arg0, %arg2, %c0_i32, %c0_i32_0 : i32, i32, i32, i32
  }
  func.func @transform_1(%arg0: i32, %arg1: i32, %arg2: i32) -> (i32, i32) {
    %c0_i32 = arith.constant 0 : i32
    %c0_i32_0 = arith.constant 0 : i32
    return %c0_i32, %arg1 : i32, i32
  }
  func.func @transform_2(%arg0: i32, %arg1: i32, %arg2: i32) -> (i32, i32) {
    %c0_i32 = arith.constant 0 : i32
    %c0_i32_0 = arith.constant 0 : i32
    return %c0_i32, %arg1 : i32, i32
  }
  func.func @transform_3(%arg0: i32, %arg1: i32, %arg2: i32) -> (i32, i32, i32, i32) {
    %c0_i32 = arith.constant 0 : i32
    %c0_i32_0 = arith.constant 0 : i32
    return %arg0, %arg2, %c0_i32, %arg1 : i32, i32, i32, i32
  }
}

</mosaic_0001>

<llo_original>
// kernel: tpu_custom_call.1
$region0: #{tpu_custom_call.1}
  #allocation0 [shape = 'u32[]', space=smem, size = 0x4, offset = 0x4, fixed_abs, tag = 'smem constant byte address 0x4 - core index']
  #allocation1 [shape = 'u32[144,128]{1,0:T(1,128)}', space=vmem, size = 0x12000, scoped, tag = 'internal scratch']
  %s0 = inlined_call_operand.hbm [shape: f32[2,16,16,36], index: 0, kind: input, shape index: {}]
  %s1 = inlined_call_operand.hbm [shape: f32[36,128], index: 1, kind: input, shape index: {}]
  %s2 = inlined_call_operand.vmem [shape: f32[1,128], index: 2, kind: input, shape index: {}]
  %s3 = inlined_call_operand.hbm [shape: f32[2,16,16,128], index: 3, kind: output, shape index: {}]
  %s4 = sld [smem:[#allocation0]]
  $region53: #{tpu_custom_call.1} parent=0
    _
  %s6 = ssub.s32 1, %s4
  %s7 = scalar_select 0, %s6, %s4
  $region1: #{tpu_custom_call.1} parent=0
    #allocation2 [shape = 'u8[131072]{0}', space=vmem, size = 0x20000, scoped, tag = 'input window, operand 0']
    #allocation3 [shape = 's32[2]{0}', space=sflag, size = 0x8, scoped, tag = 'scoped memory for tpu_custom_call.1']
    #allocation4 [shape = 's32[2]{0}', space=sflag, size = 0x8, scoped, tag = 'scoped memory for tpu_custom_call.1']
    #allocation5 [shape = 'u8[20480]{0}', space=vmem, size = 0x5000, scoped, tag = 'input window, operand 1, single buffered']
    #allocation6 [shape = 's32[1]{0}', space=sflag, size = 0x4, scoped, tag = 'scoped memory for tpu_custom_call.1']
    #allocation7 [shape = 'u8[131072]{0}', space=vmem, size = 0x20000, scoped, tag = 'output window, operand 0']
    %8 = vsyncpa [#allocation3], 0
    %s9 = scalar_lea.sflag [#allocation3], 1
    %10 = vsyncpa %s9, 0
    %11 = vsyncpa [#allocation6], 0
    %12 = vsyncpa [#allocation4], 0
    %s13 = scalar_lea.sflag [#allocation4], 1
    %14 = vsyncpa %s13, 0
    loop: start=0, step=1, limit=6
    $region2: #{tpu_custom_call.1} parent=1 // loop_pre_header
      _
    $region3: #{tpu_custom_call.1} parent=1 // loop_header
      %s16 = sphi 0, %s20
      %p17 = scmp.ge.s32.totalorder %s16, 6
      %s23 = sphi 0, %s42
      %s24 = sphi 0, %s38
      %s25 = sphi 0, %s34
      %s26 = sphi 0, %s23
      %s27 = sphi 0, %s24
      %s28 = sphi 0, %s25
      %s29 = sphi 0, %s26
      %s30 = sphi 0, %s27
      %s31 = sphi 0, %s28
      %s47 = sphi 0, %s49
      %s50 = sphi 0, %s47
      %s51 = sphi 0, %s50
      %s67 = sphi 0, %s51
      %s73 = sphi 0, %s75
      %s76 = sphi 0, %s73
      %s77 = sphi 0, %s76
      %s93 = sphi 0, %s77
      %s99 = sphi 0, %s101
      %s102 = sphi 0, %s99
      %s103 = sphi 0, %s102
      %s119 = sphi 0, %s103
      %s129 = sphi 0, %s131
      %s132 = sphi 0, %s129
      %s133 = sphi 0, %s132
      %s149 = sphi 0, %s133
    $region4: #{tpu_custom_call.1} parent=1 // loop_header_branch
      %19 = sbr.rel (%p17) target = $region8
    $region5: #{tpu_custom_call.1} parent=1 // loop_body
      %s21 = ssub.s32 %s16, 1
      %s22 = ssub.s32 %s16, 2
      %s32 = sadd.s32 1, %s25
      %p33 = scmp.ge.s32.totalorder %s32, 2
      %s34 = scalar_select %p33, 0, %s32
      %s35 = sadd.s32 1, %s24
      %s36 = scalar_select %p33, %s35, %s24
      %p37 = scmp.ge.s32.totalorder %s36, 1
      %s38 = scalar_select %p37, 0, %s36
      %s39 = sadd.s32 1, %s23
      %s40 = scalar_select %p37, %s39, %s23
      %p41 = scmp.ge.s32.totalorder %s40, 2
      %s42 = scalar_select %p41, 0, %s40
      %s43 = ssub.s32 %s23, %s42
      %s44 = ssub.s32 %s25, %s34
      %s45 = sor.u32 %s43, %s44
      %p46 = scmp.eq.s32.totalorder %s45, 0
      %s48 = sadd.s32 %s47, 1
      %s49 = scalar_select %p46, %s47, %s48
      %p52 = pneg %p46
      %p53 = scmp.eq.s32.totalorder %s16, 3
      %p54 = por %p52, %p53
      %p55 = scmp.ne.s32.totalorder %s47, %s50
      %p56 = scmp.eq.s32.totalorder %s16, 0
      %p57 = por %p55, %p56
      %p58 = scmp.ne.s32.totalorder %s47, %s50
      %p59 = scmp.eq.s32.totalorder %s21, 3
      %p60 = por %p58, %p59
      %p61 = scmp.ne.s32.totalorder %s50, %s51
      %p62 = scmp.eq.s32.totalorder %s21, 0
      %p63 = por %p61, %p62
      %p64 = scmp.ne.s32.totalorder %s50, %s51
      %p65 = scmp.eq.s32.totalorder %s22, 3
      %p66 = por %p64, %p65
      %p68 = scmp.ne.s32.totalorder %s51, %s67
      %p69 = scmp.eq.s32.totalorder %s22, 0
      %p70 = por %p68, %p69
      %s71 = ssub.s32 %s24, %s38
      %p72 = scmp.eq.s32.totalorder %s71, 0
      %s74 = sadd.s32 %s73, 1
      %s75 = scalar_select %p72, %s73, %s74
      %p78 = pneg %p72
      %p79 = scmp.eq.s32.totalorder %s16, 3
      %p80 = por %p78, %p79
      %p81 = scmp.ne.s32.totalorder %s73, %s76
      %p82 = scmp.eq.s32.totalorder %s16, 0
      %p83 = por %p81, %p82
      %p84 = scmp.ne.s32.totalorder %s73, %s76
      %p85 = scmp.eq.s32.totalorder %s21, 3
      %p86 = por %p84, %p85
      %p87 = scmp.ne.s32.totalorder %s76, %s77
      %p88 = scmp.eq.s32.totalorder %s21, 0
      %p89 = por %p87, %p88
      %p90 = scmp.ne.s32.totalorder %s76, %s77
      %p91 = scmp.eq.s32.totalorder %s22, 3
      %p92 = por %p90, %p91
      %p94 = scmp.ne.s32.totalorder %s77, %s93
      %p95 = scmp.eq.s32.totalorder %s22, 0
      %p96 = por %p94, %p95
      %s97 = ssub.s32 %s24, %s38
      %p98 = scmp.eq.s32.totalorder %s97, 0
      %s100 = sadd.s32 %s99, 1
      %s101 = scalar_select %p98, %s99, %s100
      %p104 = pneg %p98
      %p105 = scmp.eq.s32.totalorder %s16, 3
      %p106 = por %p104, %p105
      %p107 = scmp.ne.s32.totalorder %s99, %s102
      %p108 = scmp.eq.s32.totalorder %s16, 0
      %p109 = por %p107, %p108
      %p110 = scmp.ne.s32.totalorder %s99, %s102
      %p111 = scmp.eq.s32.totalorder %s21, 3
      %p112 = por %p110, %p111
      %p113 = scmp.ne.s32.totalorder %s102, %s103
      %p114 = scmp.eq.s32.totalorder %s21, 0
      %p115 = por %p113, %p114
      %p116 = scmp.ne.s32.totalorder %s102, %s103
      %p117 = scmp.eq.s32.totalorder %s22, 3
      %p118 = por %p116, %p117
      %p120 = scmp.ne.s32.totalorder %s103, %s119
      %p121 = scmp.eq.s32.totalorder %s22, 0
      %p122 = por %p120, %p121
      %s123 = ssub.s32 %s23, %s42
      %s124 = ssub.s32 %s25, %s34
      %s125 = sor.u32 %s123, %s124
      %s126 = ssub.s32 %s24, %s38
      %s127 = sor.u32 %s125, %s126
      %p128 = scmp.eq.s32.totalorder %s127, 0
      %s130 = sadd.s32 %s129, 1
      %s131 = scalar_select %p128, %s129, %s130
      %p134 = pneg %p128
      %p135 = scmp.eq.s32.totalorder %s16, 3
      %p136 = por %p134, %p135
      %p137 = scmp.ne.s32.totalorder %s129, %s132
      %p138 = scmp.eq.s32.totalorder %s16, 0
      %p139 = por %p137, %p138
      %p140 = scmp.ne.s32.totalorder %s129, %s132
      %p141 = scmp.eq.s32.totalorder %s21, 3
      %p142 = por %p140, %p141
      %p143 = scmp.ne.s32.totalorder %s132, %s133
      %p144 = scmp.eq.s32.totalorder %s21, 0
      %p145 = por %p143, %p144
      %p146 = scmp.ne.s32.totalorder %s132, %s133
      %p147 = scmp.eq.s32.totalorder %s22, 3
      %p148 = por %p146, %p147
      %p150 = scmp.ne.s32.totalorder %s133, %s149
      %p151 = scmp.eq.s32.totalorder %s22, 0
      %p152 = por %p150, %p151
      %p153 = scmp.le.s32.totalorder 1, %s16
      %p154 = scmp.lt.s32.totalorder %s16, 5
      %p155 = pnand %p153, %p154
      %p156 = pneg %p155
      // Predicated region
      $region9: #{tpu_custom_call.1} parent=5 // pred_check
        _
      $region10: #{tpu_custom_call.1} parent=5 // pred_check_branch
        %158 = sbr.rel (%p155) target = $region12
      $region11: #{tpu_custom_call.1} parent=5 // pred_region
        %s159 = ssub.s32 %s16, 1
        // Predicated region
        $region13: #{tpu_custom_call.1} parent=11 // pred_check
          %p160 = pneg %p89
        $region14: #{tpu_custom_call.1} parent=11 // pred_check_branch
          %162 = sbr.rel (%p160) target = $region16
        $region15: #{tpu_custom_call.1} parent=11 // pred_region
          %s164 = ssub.s32 640, 640
          %165 = vsyncadd [#allocation6], %s164
          %s166 = smul.addr %s27, 128
          %s167 = scalar_lea.hbm %s1, %s166
          %s168 = sshll.u32 [#allocation5], 4
          %s169 = int_to_ptr.vmem [resolvable:$true] %s168
          %174 = dma.hbm_to_vmem [thread:$0]  %s167, 640, %s169, [#allocation6], 128, 128, 8
        $region16: #{tpu_custom_call.1} parent=11 // pred_fallthru
          _
        // Predicated region
        $region17: #{tpu_custom_call.1} parent=11 // pred_check
          %p175 = pneg %p115
        $region18: #{tpu_custom_call.1} parent=11 // pred_check_branch
          %177 = sbr.rel (%p175) target = $region20
        $region19: #{tpu_custom_call.1} parent=11 // pred_region
          %p178 = scmp.lt.s32.totalorder %s27, 0
          %s179 = scalar_select %p178, %s27, 0
          %s180 = scalar_lea.vmem %s2, %s179
        $region20: #{tpu_custom_call.1} parent=11 // pred_fallthru
          _
      $region12: #{tpu_custom_call.1} parent=5 // pred_fallthru
        _
      %p181 = scmp.lt.s32.totalorder %s16, 4
      // Predicated region
      $region21: #{tpu_custom_call.1} parent=5 // pred_check
        %p182 = pneg %p181
      $region22: #{tpu_custom_call.1} parent=5 // pred_check_branch
        %184 = sbr.rel (%p182) target = $region24
      $region23: #{tpu_custom_call.1} parent=5 // pred_region
        // Predicated region
        $region25: #{tpu_custom_call.1} parent=23 // pred_check
          %p185 = pneg %p57
        $region26: #{tpu_custom_call.1} parent=23 // pred_check_branch
          %187 = sbr.rel (%p185) target = $region28
        $region27: #{tpu_custom_call.1} parent=23 // pred_region
          %s188 = sand.u32 %s47, 1
          %s189 = scalar_lea.sflag [#allocation3], %s188
          %s190 = sand.u32 %s47, 1
          %s191 = smul.addr %s190, 128
          %s192 = scalar_lea.vmem [#allocation2], %s191
          %s193 = smul.u32 8, %s25
          %s195 = ssub.s32 2048, 2048
          %196 = vsyncadd %s189, %s195
          %s197 = smul.addr %s193, 2
          %s198 = smul.addr %s23, 32
          %s199 = sadd.s32 %s197, %s198
          %s200 = smul.addr %s199, 128
          %s201 = scalar_lea.hbm %s0, %s200
          %s202 = sshll.u32 %s192, 4
          %s203 = int_to_ptr.vmem [resolvable:$true] %s202
          %208 = dma.hbm_to_vmem [thread:$0]  %s201, 2048, %s203, %s189, 128, 128, 8
        $region28: #{tpu_custom_call.1} parent=23 // pred_fallthru
          _
      $region24: #{tpu_custom_call.1} parent=5 // pred_fallthru
        _
      %p209 = scmp.le.s32.totalorder 1, %s16
      %p210 = scmp.lt.s32.totalorder %s16, 5
      %p211 = pnand %p209, %p210
      %p212 = pneg %p211
      // Predicated region
      $region29: #{tpu_custom_call.1} parent=5 // pred_check
        _
      $region30: #{tpu_custom_call.1} parent=5 // pred_check_branch
        %214 = sbr.rel (%p211) target = $region32
      $region31: #{tpu_custom_call.1} parent=5 // pred_region
        %s215 = ssub.s32 %s16, 1
        %s216 = sand.u32 %s50, 1
        %s217 = scalar_lea.sflag [#allocation3], %s216
        %s218 = sand.u32 %s50, 1
        %s219 = smul.addr %s218, 128
        %s220 = scalar_lea.vmem [#allocation2], %s219
        // Predicated region
        $region33: #{tpu_custom_call.1} parent=31 // pred_check
          %p221 = pneg %p63
        $region34: #{tpu_custom_call.1} parent=31 // pred_check_branch
          %223 = sbr.rel (%p221) target = $region36
        $region35: #{tpu_custom_call.1} parent=31 // pred_region
          %224 = dma.done %s217, 2048
        $region36: #{tpu_custom_call.1} parent=31 // pred_fallthru
          _
        // Predicated region
        $region37: #{tpu_custom_call.1} parent=31 // pred_check
          %p225 = pneg %p89
        $region38: #{tpu_custom_call.1} parent=31 // pred_check_branch
          %227 = sbr.rel (%p225) target = $region40
        $region39: #{tpu_custom_call.1} parent=31 // pred_region
          %228 = dma.done [#allocation6], 640
        $region40: #{tpu_custom_call.1} parent=31 // pred_fallthru
          _
        %s229 = sand.u32 %s50, 1
        %s230 = scalar_lea.sflag [#allocation3], %s229
        %s231 = sand.u32 %s50, 1
        %s232 = smul.addr %s231, 128
        %s233 = scalar_lea.vmem [#allocation2], %s232
        %p234 = pneg %p63
        %p235 = pneg %p60
        %p236 = pneg %p89
        %p237 = pneg %p86
        %p238 = scmp.lt.s32.totalorder %s27, 0
        %s239 = scalar_select %p238, %s27, 0
        %s240 = scalar_lea.vmem %s2, %s239
        %p241 = pneg %p115
        %p242 = pneg %p112
        %p243 = pneg %p145
        %p244 = pneg %p142
        %s245 = sand.u32 %s132, 1
        %s246 = scalar_lea.sflag [#allocation4], %s245
        %s247 = sand.u32 %s132, 1
        %s248 = smul.addr %s247, 128
        %s249 = scalar_lea.vmem [#allocation7], %s248
        %s250 = smul.u32 8, %s28
        %p251 = scmp.lt.s32.totalorder %s27, 0
        %s252 = scalar_select %p251, %s27, 0
        %s253 = scalar_lea.vmem %s2, %s252
        %s254 = smul.u32 8, %s28
        %v255 = vld [vmem:[%s220] sm:$0xff]
        %v256 = vld [vmem:[%s220 + $0x8] sm:$0xff]
        %v257 = vld [vmem:[%s220 + $0x10] sm:$0xff]
        %v258 = vld [vmem:[%s220 + $0x18] sm:$0xff]
        %v259 = vld [vmem:[%s220 + $0x20] sm:$0xff]
        %v260 = vld [vmem:[%s220 + $0x28] sm:$0xff]
        %v261 = vld [vmem:[%s220 + $0x30] sm:$0xff]
        %v262 = vld [vmem:[%s220 + $0x38] sm:$0xff]
        %v263 = vld [vmem:[%s220 + $0x40] sm:$0xff]
        %v264 = vld [vmem:[%s220 + $0x48] sm:$0xff]
        %v265 = vld [vmem:[%s220 + $0x50] sm:$0xff]
        %v266 = vld [vmem:[%s220 + $0x58] sm:$0xff]
        %v267 = vld [vmem:[%s220 + $0x60] sm:$0xff]
        %v268 = vld [vmem:[%s220 + $0x68] sm:$0xff]
        %v269 = vld [vmem:[%s220 + $0x70] sm:$0xff]
        %v270 = vld [vmem:[%s220 + $0x78] sm:$0xff]
        %v271 = vld [vmem:[#allocation5] sm:$0xff]
        %v272 = vld [vmem:[#allocation5 + $0x8] sm:$0xff]
        %v273 = vld [vmem:[#allocation5 + $0x10] sm:$0xff]
        %v274 = vld [vmem:[#allocation5 + $0x18] sm:$0xff]
        %v275 = vld [vmem:[#allocation5 + $0x20] sm:$0xf]
        %v276 = vld [vmem:[%s253] sm:$0x1]
        %v278 = vlaneseq
        %v279 = vshrl.u32 %v278, 7
        %v280 = vsub.s32 0, %v279
        %v281 = vrot.slane %v276, %v280
        %vm283 = vcmask 293888
        %v285 = vsel %vm283, %v255, 0
        %v288 = vsel %vm283, %v256, 0
        %v291 = vsel %vm283, %v257, 0
        %v294 = vsel %vm283, %v258, 0
        %v297 = vsel %vm283, %v259, 0
        %v300 = vsel %vm283, %v260, 0
        %v303 = vsel %vm283, %v261, 0
        %v306 = vsel %vm283, %v262, 0
        %v309 = vsel %vm283, %v263, 0
        %v312 = vsel %vm283, %v264, 0
        %v315 = vsel %vm283, %v265, 0
        %v318 = vsel %vm283, %v266, 0
        %v321 = vsel %vm283, %v267, 0
        %v324 = vsel %vm283, %v268, 0
        %v327 = vsel %vm283, %v269, 0
        %v330 = vsel %vm283, %v270, 0
        %vm332 = vcmask 1043456
        %v334 = vsel %vm332, %v275, 0
        %336 = vmatprep.subr.mxu0 0.0
        %337 = vmatpush1.msra.mxu0 %v271
        %338 = vmatprep.subr.mxu0 0.0
        %339 = vmatpush1.msra.mxu0 %v272
        %340 = vmatprep.subr.mxu0 0.0
        %341 = vmatpush1.msra.mxu0 %v273
        %342 = vmatprep.subr.mxu0 0.0
        %343 = vmatpush1.msra.mxu0 %v274
        %344 = vmatprep.subr.mxu0 0.0
        %345 = vmatpush1.msra.mxu0 %v334
        %346 = vmatprep.subr.mxu0 0.0
        %347 = vmatpush1.msra.mxu0 0.0
        %348 = vmatprep.subr.mxu0 0.0
        %349 = vmatpush1.msra.mxu0 0.0
        %350 = vmatprep.subr.mxu0 0.0
        %351 = vmatpush1.msra.mxu0 0.0
        %352 = vmatprep.subr.mxu0 0.0
        %353 = vmatpush1.msra.mxu0 0.0
        %354 = vmatprep.subr.mxu0 0.0
        %355 = vmatpush1.msra.mxu0 0.0
        %356 = vmatprep.subr.mxu0 0.0
        %357 = vmatpush1.msra.mxu0 0.0
        %358 = vmatprep.subr.mxu0 0.0
        %359 = vmatpush1.msra.mxu0 0.0
        %360 = vmatprep.subr.mxu0 0.0
        %361 = vmatpush1.msra.mxu0 0.0
        %362 = vmatprep.subr.mxu0 0.0
        %363 = vmatpush1.msra.mxu0 0.0
        %364 = vmatprep.subr.mxu0 0.0
        %365 = vmatpush1.msra.mxu0 0.0
        %366 = vmatprep.subr.mxu0 0.0
        %367 = vmatpush1.msra.mxu0 0.0
        %368 = vmatprep.subr.mxu0 0.0
        %369 = vmatpush1.msra.mxu0 0.0
        %370 = vmatprep.subr.mxu0 0.0
        %371 = vmatpush1.msra.mxu0 0.0
        %372 = vmatprep.subr.mxu0 0.0
        %373 = vmatpush1.msra.mxu0 0.0
        %374 = vmatprep.subr.mxu0 0.0
        %375 = vmatpush1.msra.mxu0 0.0
        %376 = vmatprep.subr.mxu0 0.0
        %377 = vmatpush1.msra.mxu0 0.0
        %378 = vmatprep.subr.mxu0 0.0
        %379 = vmatpush1.msra.mxu0 0.0
        %380 = vmatprep.subr.mxu0 0.0
        %381 = vmatpush1.msra.mxu0 0.0
        %382 = vmatprep.subr.mxu0 0.0
        %383 = vmatpush1.msra.mxu0 0.0
        %384 = vmatprep.subr.mxu0 0.0
        %385 = vmatpush1.msra.mxu0 0.0
        %386 = vmatprep.subr.mxu0 0.0
        %387 = vmatpush1.msra.mxu0 0.0
        %388 = vmatprep.subr.mxu0 0.0
        %389 = vmatpush1.msra.mxu0 0.0
        %390 = vmatprep.subr.mxu0 0.0
        %391 = vmatpush1.msra.mxu0 0.0
        %392 = vmatprep.subr.mxu0 0.0
        %393 = vmatpush1.msra.mxu0 0.0
        %394 = vmatprep.subr.mxu0 0.0
        %395 = vmatpush1.msra.mxu0 0.0
        %396 = vmatprep.subr.mxu0 0.0
        %397 = vmatpush1.msra.mxu0 0.0
        %398 = vmatprep.subr.mxu0 0.0
        %399 = vmatpush1.msra.mxu0 0.0
        %400 = vmatprep.mubr.f32.mxu0 0.0
        %401 = vmatmul.mubr.f32.gmra.mrb[0].mxu0 %v285
        %v402 = vpop.f32.mrb[0].mxu0
        %v403 = vadd.f32 %v281, %v402
        %v404 = vpop.f32.mrb[0].mxu0
        %405 = vmatprep.mubr.f32.mxu0 0.0
        %406 = vmatmul.mubr.f32.gmra.mrb[0].mxu0 %v288
        %v407 = vpop.f32.mrb[0].mxu0
        %v408 = vadd.f32 %v281, %v407
        %v409 = vpop.f32.mrb[0].mxu0
        %410 = vmatprep.mubr.f32.mxu0 0.0
        %411 = vmatmul.mubr.f32.gmra.mrb[0].mxu0 %v291
        %v412 = vpop.f32.mrb[0].mxu0
        %v413 = vadd.f32 %v281, %v412
        %v414 = vpop.f32.mrb[0].mxu0
        %415 = vmatprep.mubr.f32.mxu0 0.0
        %416 = vmatmul.mubr.f32.gmra.mrb[0].mxu0 %v294
        %v417 = vpop.f32.mrb[0].mxu0
        %v418 = vadd.f32 %v281, %v417
        %v419 = vpop.f32.mrb[0].mxu0
        %420 = vmatprep.mubr.f32.mxu0 0.0
        %421 = vmatmul.mubr.f32.gmra.mrb[0].mxu0 %v297
        %v422 = vpop.f32.mrb[0].mxu0
        %v423 = vadd.f32 %v281, %v422
        %v424 = vpop.f32.mrb[0].mxu0
        %425 = vmatprep.mubr.f32.mxu0 0.0
        %426 = vmatmul.mubr.f32.gmra.mrb[0].mxu0 %v300
        %v427 = vpop.f32.mrb[0].mxu0
        %v428 = vadd.f32 %v281, %v427
        %v429 = vpop.f32.mrb[0].mxu0
        %430 = vmatprep.mubr.f32.mxu0 0.0
        %431 = vmatmul.mubr.f32.gmra.mrb[0].mxu0 %v303
        %v432 = vpop.f32.mrb[0].mxu0
        %v433 = vadd.f32 %v281, %v432
        %v434 = vpop.f32.mrb[0].mxu0
        %435 = vmatprep.mubr.f32.mxu0 0.0
        %436 = vmatmul.mubr.f32.gmra.mrb[0].mxu0 %v306
        %v437 = vpop.f32.mrb[0].mxu0
        %v438 = vadd.f32 %v281, %v437
        %v439 = vpop.f32.mrb[0].mxu0
        %440 = vmatprep.mubr.f32.mxu0 0.0
        %441 = vmatmul.mubr.f32.gmra.mrb[0].mxu0 %v309
        %v442 = vpop.f32.mrb[0].mxu0
        %v443 = vadd.f32 %v281, %v442
        %v444 = vpop.f32.mrb[0].mxu0
        %445 = vmatprep.mubr.f32.mxu0 0.0
        %446 = vmatmul.mubr.f32.gmra.mrb[0].mxu0 %v312
        %v447 = vpop.f32.mrb[0].mxu0
        %v448 = vadd.f32 %v281, %v447
        %v449 = vpop.f32.mrb[0].mxu0
        %450 = vmatprep.mubr.f32.mxu0 0.0
        %451 = vmatmul.mubr.f32.gmra.mrb[0].mxu0 %v315
        %v452 = vpop.f32.mrb[0].mxu0
        %v453 = vadd.f32 %v281, %v452
        %v454 = vpop.f32.mrb[0].mxu0
        %455 = vmatprep.mubr.f32.mxu0 0.0
        %456 = vmatmul.mubr.f32.gmra.mrb[0].mxu0 %v318
        %v457 = vpop.f32.mrb[0].mxu0
        %v458 = vadd.f32 %v281, %v457
        %v459 = vpop.f32.mrb[0].mxu0
        %460 = vmatprep.mubr.f32.mxu0 0.0
        %461 = vmatmul.mubr.f32.gmra.mrb[0].mxu0 %v321
        %v462 = vpop.f32.mrb[0].mxu0
        %v463 = vadd.f32 %v281, %v462
        %v464 = vpop.f32.mrb[0].mxu0
        %465 = vmatprep.mubr.f32.mxu0 0.0
        %466 = vmatmul.mubr.f32.gmra.mrb[0].mxu0 %v324
        %v467 = vpop.f32.mrb[0].mxu0
        %v468 = vadd.f32 %v281, %v467
        %v469 = vpop.f32.mrb[0].mxu0
        %470 = vmatprep.mubr.f32.mxu0 0.0
        %471 = vmatmul.mubr.f32.gmra.mrb[0].mxu0 %v327
        %v472 = vpop.f32.mrb[0].mxu0
        %v473 = vadd.f32 %v281, %v472
        %v474 = vpop.f32.mrb[0].mxu0
        %475 = vmatprep.mubr.f32.mxu0 0.0
        %476 = vmatmul.mubr.f32.gmra.mrb[0].mxu0 %v330
        %v477 = vpop.f32.mrb[0].mxu0
        %v478 = vadd.f32 %v281, %v477
        %v479 = vpop.f32.mrb[0].mxu0
        %480 = vdwg.mxu0
        %v481 = vmax.f32 %v403, 0.0
        %v482 = vmax.f32 %v408, 0.0
        %v483 = vmax.f32 %v413, 0.0
        %v484 = vmax.f32 %v418, 0.0
        %v485 = vmax.f32 %v423, 0.0
        %v486 = vmax.f32 %v428, 0.0
        %v487 = vmax.f32 %v433, 0.0
        %v488 = vmax.f32 %v438, 0.0
        %v489 = vmax.f32 %v443, 0.0
        %v490 = vmax.f32 %v448, 0.0
        %v491 = vmax.f32 %v453, 0.0
        %v492 = vmax.f32 %v458, 0.0
        %v493 = vmax.f32 %v463, 0.0
        %v494 = vmax.f32 %v468, 0.0
        %v495 = vmax.f32 %v473, 0.0
        %v496 = vmax.f32 %v478, 0.0
        %497 = vst [vmem:[%s249] sm:$0xff] %v481
        %498 = vst [vmem:[%s249 + $0x8] sm:$0xff] %v482
        %499 = vst [vmem:[%s249 + $0x10] sm:$0xff] %v483
        %500 = vst [vmem:[%s249 + $0x18] sm:$0xff] %v484
        %501 = vst [vmem:[%s249 + $0x20] sm:$0xff] %v485
        %502 = vst [vmem:[%s249 + $0x28] sm:$0xff] %v486
        %503 = vst [vmem:[%s249 + $0x30] sm:$0xff] %v487
        %504 = vst [vmem:[%s249 + $0x38] sm:$0xff] %v488
        %505 = vst [vmem:[%s249 + $0x40] sm:$0xff] %v489
        %506 = vst [vmem:[%s249 + $0x48] sm:$0xff] %v490
        %507 = vst [vmem:[%s249 + $0x50] sm:$0xff] %v491
        %508 = vst [vmem:[%s249 + $0x58] sm:$0xff] %v492
        %509 = vst [vmem:[%s249 + $0x60] sm:$0xff] %v493
        %510 = vst [vmem:[%s249 + $0x68] sm:$0xff] %v494
        %511 = vst [vmem:[%s249 + $0x70] sm:$0xff] %v495
        %512 = vst [vmem:[%s249 + $0x78] sm:$0xff] %v496
        %s513 = sand.u32 %s132, 1
        %s514 = scalar_lea.sflag [#allocation4], %s513
        %s515 = sand.u32 %s132, 1
        %s516 = smul.addr %s515, 128
        %s517 = scalar_lea.vmem [#allocation7], %s516
        // Predicated region
        $region41: #{tpu_custom_call.1} parent=31 // pred_check
          %p518 = pneg %p142
        $region42: #{tpu_custom_call.1} parent=31 // pred_check_branch
          %520 = sbr.rel (%p518) target = $region44
        $region43: #{tpu_custom_call.1} parent=31 // pred_region
          %s521 = smul.u32 8, %s28
          %s523 = ssub.s32 2048, 2048
          %524 = vsyncadd %s514, %s523
          %s525 = smul.addr %s521, 2
          %s526 = sadd.s32 %s27, %s525
          %s527 = smul.addr %s26, 32
          %s528 = sadd.s32 %s526, %s527
          %s529 = smul.addr %s528, 128
          %s530 = scalar_lea.hbm %s3, %s529
          %s531 = sshll.u32 %s517, 4
          %s532 = int_to_ptr.vmem [resolvable:$true] %s531
          %537 = dma.vmem_to_hbm [thread:$0]  %s532, 2048, %s530, %s514, 128, 128, 8
        $region44: #{tpu_custom_call.1} parent=31 // pred_fallthru
          _
      $region32: #{tpu_custom_call.1} parent=5 // pred_fallthru
        _
      %p538 = scmp.le.s32.totalorder 2, %s16
      // Predicated region
      $region45: #{tpu_custom_call.1} parent=5 // pred_check
        %p539 = pneg %p538
      $region46: #{tpu_custom_call.1} parent=5 // pred_check_branch
        %541 = sbr.rel (%p539) target = $region48
      $region47: #{tpu_custom_call.1} parent=5 // pred_region
        %s542 = ssub.s32 %s16, 2
        // Predicated region
        $region49: #{tpu_custom_call.1} parent=47 // pred_check
          %p543 = pneg %p148
        $region50: #{tpu_custom_call.1} parent=47 // pred_check_branch
          %545 = sbr.rel (%p543) target = $region52
        $region51: #{tpu_custom_call.1} parent=47 // pred_region
          %s546 = sand.u32 %s133, 1
          %s547 = scalar_lea.sflag [#allocation4], %s546
          %s548 = sand.u32 %s133, 1
          %s549 = smul.addr %s548, 128
          %s550 = scalar_lea.vmem [#allocation7], %s549
          %551 = dma.done %s547, 2048
        $region52: #{tpu_custom_call.1} parent=47 // pred_fallthru
          _
      $region48: #{tpu_custom_call.1} parent=5 // pred_fallthru
        _
    $region6: #{tpu_custom_call.1} parent=1 // loop_footer
      %s20 = sadd.s32 1, %s16
    $region7: #{tpu_custom_call.1} parent=1 // loop_footer_branch
      %15 = sbr.rel target = $region3
    $region8: #{tpu_custom_call.1} parent=1 // loop_exit
      _
    %552 = vsyncpa [#allocation3], 1
    %s553 = scalar_lea.sflag [#allocation3], 1
    %554 = vsyncpa %s553, 1
    %555 = vsyncpa [#allocation6], 1
    %556 = vsyncpa [#allocation4], 1
    %s557 = scalar_lea.sflag [#allocation4], 1
    %558 = vsyncpa %s557, 1

</llo_original>
